<compile_context>
chip_gen: v6e
topology: v6e:2x2x1
jax: 0.10.0
libtpu: 0.0.40
codegen_flags: <defaults>
</compile_context>

<pallas_src>
import functools
import math

import jax
import jax.numpy as jnp
from jax.experimental import pallas as pl
from jax.experimental.pallas import tpu as pltpu


# ---------------------------------------------------------------------------
# Kernels
# ---------------------------------------------------------------------------

def _patch_copy_kernel(x_ref, o_ref, *, pad):
    """stride == patch_size, pad > 0.

    The flattened unfold of the NaN-left-padded row is just [NaN*pad, row].
    Build it in registers and do a single lane-dense full-tile store.
    """
    x = x_ref[...]
    nan_block = jnp.full((x.shape[0], pad), jnp.nan, dtype=x.dtype)
    o_ref[...] = jnp.concatenate((nan_block, x), axis=-1)


def _patch_unfold_kernel(x_ref, o_ref, *, pad, num_patches, patch_size,
                         patch_stride):
    """General (overlapping or gapped) stride path.

    Builds the NaN-left-padded row once (NaN constant hoisted out of the
    loop), takes static per-patch slices, and writes the whole flattened
    (bm, num_patches * patch_size) tile with ONE lane-dense store.
    """
    x = x_ref[...]
    bm = x.shape[0]
    if pad > 0:
        nan_block = jnp.full((bm, pad), jnp.nan, dtype=x.dtype)
        padded = jnp.concatenate((nan_block, x), axis=-1)
    else:
        padded = x
    # TODO(synk): for very large num_patches (e.g. long sequences with small
    # stride) replace this static unroll with a fori_loop over 128-lane
    # output chunks to bound code size / vreg live ranges.
    patches = [
        padded[:, p * patch_stride:p * patch_stride + patch_size]
        for p in range(num_patches)
    ]
    o_ref[...] = jnp.concatenate(patches, axis=-1)


# ---------------------------------------------------------------------------
# Tile selection
# ---------------------------------------------------------------------------

# Conservative budget: 2x(in+out) blocks must fit well under v7x's 64 MiB
# physical VMEM (v5e/v6e have 128 MiB, so this is always safe).
_VMEM_BUDGET_BYTES = 40 * 1024 * 1024
_TARGET_OUT_BLOCK_BYTES = 8 * 1024 * 1024


def _sublane_packing(dtype):
    # f32 -> 8, bf16 -> 16, int8/fp8 -> 32 sublanes per packed vreg row group.
    return max(8, 32 // jnp.dtype(dtype).itemsize)


def _round_up(a, m):
    return ((a + m - 1) // m) * m


def _pick_batch_tile(B, L, out_w, dtype, requested=None):
    """Pick a batch tile aligned to the dtype's sublane packing, clamped to
    the VMEM budget, and small enough that the grid has >= 2 steps when B
    allows it (so v7x's two TensorCores both get work)."""
    itemsize = jnp.dtype(dtype).itemsize
    pack = _sublane_packing(dtype)
    row_bytes = (L + out_w) * itemsize

    # Hard cap so double-buffered in+out blocks stay under the VMEM budget
    # (applies even to a user-supplied block_batch).
    bm_cap = max(1, _VMEM_BUDGET_BYTES // (2 * max(1, row_bytes)))

    if requested is not None:
        bm = requested
    else:
        bm = max(1, _TARGET_OUT_BLOCK_BYTES // max(1, out_w * itemsize))

    bm = min(bm, bm_cap, B)

    # Keep at least 2 grid iterations when possible (megacore on v7x).
    if B >= 2 * pack:
        bm = min(bm, _round_up(pl.cdiv(B, 2), pack))

    if B >= pack:
        bm = max(pack, (bm // pack) * pack)
    else:
        bm = B
    return int(bm)


# ---------------------------------------------------------------------------
# Wrapper
# ---------------------------------------------------------------------------

def patch_forward(x, patch_size: int, patch_stride: int, *, block_batch=None):
    """JAX wrapper reproducing Patch.forward via a Pallas TPU kernel."""
    assert x.ndim >= 1
    assert jnp.issubdtype(x.dtype, jnp.floating), (
        "NaN left-padding requires a floating dtype")

    lead = x.shape[:-1]
    L = x.shape[-1]
    B = math.prod(lead) if lead else 1

    pad = 0 if L % patch_size == 0 else patch_size - (L % patch_size)
    padded_len = L + pad
    num_patches = (padded_len - patch_size) // patch_stride + 1
    assert num_patches >= 1
    out_w = num_patches * patch_size
    itemsize = jnp.dtype(x.dtype).itemsize

    # Fast path: no padding needed and stride == size -> unfold is a pure
    # reshape.  No HBM traffic, no kernel.
    if pad == 0 and patch_stride == patch_size:
        return x.reshape(*lead, num_patches, patch_size)

    x2 = x.reshape(B, L)

    if patch_stride == patch_size:
        # Flattened unfold is just the padded row.
        assert out_w == padded_len
        kernel = functools.partial(_patch_copy_kernel, pad=pad)
    else:
        kernel = functools.partial(
            _patch_unfold_kernel, pad=pad, num_patches=num_patches,
            patch_size=patch_size, patch_stride=patch_stride)

    bm = _pick_batch_tile(B, L, out_w, x.dtype, block_batch)
    grid = (pl.cdiv(B, bm),)

    in_block_bytes = bm * L * itemsize
    out_block_bytes = bm * out_w * itemsize
    # Double-buffered input + output blocks plus headroom; capped at 48 MiB
    # so it never requests v7x's full 64 MiB physical VMEM.
    vmem_limit = int(min(48 * 1024 * 1024,
                         max(2 * (in_block_bytes + out_block_bytes)
                             + (2 << 20), 8 << 20)))

    out_flat = pl.pallas_call(
        kernel,
        out_shape=jax.ShapeDtypeStruct((B, out_w), x.dtype),
        grid=grid,
        in_specs=[pl.BlockSpec((bm, L), lambda i: (i, 0))],
        out_specs=pl.BlockSpec((bm, out_w), lambda i: (i, 0)),
        compiler_params=pltpu.CompilerParams(
            dimension_semantics=("parallel",),
            vmem_limit_bytes=vmem_limit),
        cost_estimate=pl.CostEstimate(
            flops=0,
            transcendentals=0,
            bytes_accessed=int(B * (L + out_w) * itemsize)),
    )(x2)

    return out_flat.reshape(*lead, num_patches, patch_size)


# ---------------------------------------------------------------------------
# Reference + tests
# ---------------------------------------------------------------------------

def patch_reference(x, patch_size: int, patch_stride: int):
    """Pure-JAX reference (mirrors the PyTorch code)."""
    L = x.shape[-1]
    if L % patch_size != 0:
        pad = patch_size - L % patch_size
        padding = jnp.full(x.shape[:-1] + (pad,), jnp.nan, dtype=x.dtype)
        x = jnp.concatenate((padding, x), axis=-1)
    padded_len = x.shape[-1]
    num_patches = (padded_len - patch_size) // patch_stride + 1
    starts = jnp.arange(num_patches) * patch_stride
    idx = starts[:, None] + jnp.arange(patch_size)[None, :]  # (P, patch_size)
    return x[..., idx]  # (..., P, patch_size)


def _check(out, ref, name):
    assert out.shape == ref.shape, (name, out.shape, ref.shape)
    assert out.dtype == ref.dtype, (name, out.dtype, ref.dtype)
    same = jnp.all((out == ref) | (jnp.isnan(out) & jnp.isnan(ref)))
    assert bool(same), f"Pallas output does not match reference ({name})"


if __name__ == "__main__":
    key = jax.random.PRNGKey(0)

    # Case 1: Chronos-Bolt style (stride == size), seq=40 -> NaN left-pad of 8
    # (kernel copy path, single lane-dense store).
    x1 = jax.random.normal(key, (2, 40), dtype=jnp.float32)
    out1 = jax.block_until_ready(patch_forward(x1, 16, 16))
    _check(out1, patch_reference(x1, 16, 16), "case1")

    # Case 2: pad == 0 and stride == size -> reshape fast path (no kernel).
    x2 = jax.random.normal(jax.random.PRNGKey(1), (3, 8, 48), dtype=jnp.float32)
    out2 = jax.block_until_ready(patch_forward(x2, 16, 16))
    _check(out2, patch_reference(x2, 16, 16), "case2")

    # Case 3: overlapping stride (general unfold path, pad > 0).
    x3 = jax.random.normal(jax.random.PRNGKey(2), (2, 40), dtype=jnp.float32)
    out3 = jax.block_until_ready(patch_forward(x3, 16, 8))
    _check(out3, patch_reference(x3, 16, 8), "case3")

    # Case 4: leading batch dims + multi-tile grid over batch (forced tile=8),
    # pad > 0 so the kernel path runs across 3 grid steps.
    x4 = jax.random.normal(jax.random.PRNGKey(3), (3, 8, 40), dtype=jnp.float32)
    out4 = jax.block_until_ready(patch_forward(x4, 16, 16, block_batch=8))
    _check(out4, patch_reference(x4, 16, 16), "case4")

    # Case 5: gapped stride (stride > size), pad == 0 (general path).
    x5 = jax.random.normal(jax.random.PRNGKey(4), (2, 40), dtype=jnp.float32)
    out5 = jax.block_until_ready(patch_forward(x5, 8, 16))
    _check(out5, patch_reference(x5, 8, 16), "case5")

    print("KERNEL_OK")
</pallas_src>

<mosaic_0001>
module attributes {stable_mosaic.version = 11 : i64} {
  func.func @_patch_copy_kernel(%arg0: i32, %arg1: memref<2x40xf32, #tpu.memory_space<vmem>>, %arg2: memref<2x48xf32, #tpu.memory_space<vmem>>) attributes {dimension_semantics = [#tpu.dimension_semantics<parallel>], iteration_bounds = array<i64: 1>, scalar_prefetch = 0 : i64, scratch_operands = 0 : i64, tpu.core_type = #tpu.core_type<tc>, window_params = [{transform_indices = @transform_0, window_bounds = array<i64: 2, 40>}, {transform_indices = @transform_1, window_bounds = array<i64: 2, 48>}]} {
    %c0 = arith.constant 0 : index
    %c0_0 = arith.constant 0 : index
    %0 = vector.load %arg1[%c0, %c0_0] : memref<2x40xf32, #tpu.memory_space<vmem>>, vector<2x40xf32>
    %cst = arith.constant 0x7FC00000 : f32
    %1 = vector.broadcast %cst : f32 to vector<2x8xf32>
    %2 = tpu.concatenate %1, %0 in 1 : vector<2x8xf32>, vector<2x40xf32> -> vector<2x48xf32>
    %c0_1 = arith.constant 0 : index
    %c0_2 = arith.constant 0 : index
    %3 = vector.load %arg2[%c0_1, %c0_2] : memref<2x48xf32, #tpu.memory_space<vmem>>, vector<2x48xf32>
    tpu.vector_store %arg2[%c0_1, %c0_2], %2 {strides = array<i32>} : memref<2x48xf32, #tpu.memory_space<vmem>>, vector<2x48xf32>,
    return
  }
  func.func @transform_0(%arg0: i32) -> (i32, i32) {
    %c0_i32 = arith.constant 0 : i32
    %c0_i32_0 = arith.constant 0 : i32
    return %arg0, %c0_i32 : i32, i32
  }
  func.func @transform_1(%arg0: i32) -> (i32, i32) {
    %c0_i32 = arith.constant 0 : i32
    %c0_i32_0 = arith.constant 0 : i32
    return %arg0, %c0_i32 : i32, i32
  }
}

</mosaic_0001>

<llo_original>
// kernel: tpu_custom_call.1
$region0: #{tpu_custom_call.1}
  #allocation0 [shape = 'u32[]', space=smem, size = 0x4, offset = 0x4, fixed_abs, tag = 'smem constant byte address 0x4 - core index']
  #allocation1 [shape = 'u32[144,128]{1,0:T(1,128)}', space=vmem, size = 0x12000, scoped, tag = 'internal scratch']
  %s0 = inlined_call_operand.hbm [shape: f32[2,40], index: 0, kind: input, shape index: {}]
  %s1 = inlined_call_operand.hbm [shape: f32[2,48], index: 1, kind: output, shape index: {}]
  %s2 = sld [smem:[#allocation0]]
  $region18: #{tpu_custom_call.1} parent=0
    _
  %s4 = ssub.s32 1, %s2
  %s5 = scalar_select 0, %s4, %s2
  $region1: #{tpu_custom_call.1} parent=0
    #allocation2 [shape = 'u8[1024]{0}', space=vmem, size = 0x400, scoped, tag = 'input window, operand 0, single buffered']
    #allocation3 [shape = 's32[1]{0}', space=sflag, size = 0x4, scoped, tag = 'scoped memory for tpu_custom_call.1']
    #allocation4 [shape = 's32[1]{0}', space=sflag, size = 0x4, scoped, tag = 'scoped memory for tpu_custom_call.1']
    #allocation5 [shape = 'u8[1024]{0}', space=vmem, size = 0x400, scoped, tag = 'output window, operand 0, single buffered']
    %6 = vsyncpa [#allocation3], 0
    %7 = vsyncpa [#allocation4], 0
    // Predicated region
    $region2: #{tpu_custom_call.1} parent=1 // pred_check
      _
    $region3: #{tpu_custom_call.1} parent=1 // pred_check_branch
      %9 = sbr.rel (0) target = $region5
    $region4: #{tpu_custom_call.1} parent=1 // pred_region
      %s11 = ssub.s32 32, 32
      %12 = vsyncadd [#allocation3], %s11
      %s14 = sshll.u32 [#allocation2], 4
      %s15 = int_to_ptr.vmem [resolvable:$true] %s14
      %17 = dma.hbm_to_vmem [thread:$0]  %s0, 32, %s15, [#allocation3]
    $region5: #{tpu_custom_call.1} parent=1 // pred_fallthru
      _
    // Predicated region
    $region6: #{tpu_custom_call.1} parent=1 // pred_check
      _
    $region7: #{tpu_custom_call.1} parent=1 // pred_check_branch
      %19 = sbr.rel (0) target = $region9
    $region8: #{tpu_custom_call.1} parent=1 // pred_region
      %20 = dma.done [#allocation3], 32
    $region9: #{tpu_custom_call.1} parent=1 // pred_fallthru
      _
    %v21 = vld [vmem:[#allocation2] sm:$0x3]
    %23 = vrot.lane.b32.xlu0 %v21, 8
    %v24 = vpop.permute.xlu0 %23
    %vm26 = vcmask 64512
    %v27 = vsel %vm26, nan, %v24
    %vm28 = vcmask 386048
    %29 = vst.msk [vmem:[#allocation5] sm:$0x3] %vm28, %v27
    // Predicated region
    $region10: #{tpu_custom_call.1} parent=1 // pred_check
      _
    $region11: #{tpu_custom_call.1} parent=1 // pred_check_branch
      %31 = sbr.rel (0) target = $region13
    $region12: #{tpu_custom_call.1} parent=1 // pred_region
      %s33 = ssub.s32 32, 32
      %34 = vsyncadd [#allocation4], %s33
      %s36 = sshll.u32 [#allocation5], 4
      %s37 = int_to_ptr.vmem [resolvable:$true] %s36
      %39 = dma.vmem_to_hbm [thread:$0]  %s37, 32, %s1, [#allocation4]
    $region13: #{tpu_custom_call.1} parent=1 // pred_fallthru
      _
    // Predicated region
    $region14: #{tpu_custom_call.1} parent=1 // pred_check
      _
    $region15: #{tpu_custom_call.1} parent=1 // pred_check_branch
      %41 = sbr.rel (0) target = $region17
    $region16: #{tpu_custom_call.1} parent=1 // pred_region
      %42 = dma.done [#allocation4], 32
    $region17: #{tpu_custom_call.1} parent=1 // pred_fallthru
      _
    %43 = vsyncpa [#allocation3], 1
    %44 = vsyncpa [#allocation4], 1

</llo_original>
